<compile_context>
chip_gen: v7x
topology: tpu7x:2x2x1
jax: 0.10.0
libtpu: 0.0.40
codegen_flags: <defaults>
</compile_context>

<pallas_src>
import math
from functools import partial

import jax
import jax.numpy as jnp
from jax.experimental import pallas as pl
from jax.experimental.pallas import tpu as pltpu


_VMEM_LIMIT = 48 * 1024 * 1024  # safe on v5e/v6e (128 MiB phys) and v7x (64 MiB phys)


def _tile(dim, want, align):
    """Largest multiple of `align` that divides `dim` and is <= want; else full dim."""
    t = min(want, dim)
    t -= t % align
    while t >= align:
        if dim % t == 0:
            return t
        t -= align
    return dim  # block == full array dim is always legal


# ----------------------------- matmul kernels -------------------------------

def _matmul_kernel(a_ref, b_ref, o_ref, acc_ref):
    @pl.when(pl.program_id(2) == 0)
    def _():
        acc_ref[...] = jnp.zeros_like(acc_ref)

    acc_ref[...] += jnp.dot(a_ref[...], b_ref[...],
                            preferred_element_type=jnp.float32)

    @pl.when(pl.program_id(2) == pl.num_programs(2) - 1)
    def _():
        o_ref[...] = acc_ref[...].astype(o_ref.dtype)


def matmul(a, b, *, tm=256, tn=512, tk=512, out_dtype=None):
    """a: [M, K] @ b: [K, N] -> [M, N], bf16 in/out, f32 MXU accumulation."""
    M, K = a.shape
    K2, N = b.shape
    assert K == K2
    out_dtype = out_dtype or a.dtype
    tm, tn, tk = _tile(M, tm, 8), _tile(N, tn, 128), _tile(K, tk, 128)
    return pl.pallas_call(
        _matmul_kernel,
        out_shape=jax.ShapeDtypeStruct((M, N), out_dtype),
        grid=(M // tm, N // tn, K // tk),
        in_specs=[pl.BlockSpec((tm, tk), lambda i, j, k: (i, k)),
                  pl.BlockSpec((tk, tn), lambda i, j, k: (k, j))],
        out_specs=pl.BlockSpec((tm, tn), lambda i, j, k: (i, j)),
        scratch_shapes=[pltpu.VMEM((tm, tn), jnp.float32)],
        compiler_params=pltpu.CompilerParams(
            dimension_semantics=("parallel", "parallel", "arbitrary"),
            vmem_limit_bytes=_VMEM_LIMIT),
    )(a, b)


def _matmul_res_kernel(a_ref, b_ref, r_ref, o_ref, acc_ref):
    @pl.when(pl.program_id(2) == 0)
    def _():
        acc_ref[...] = jnp.zeros_like(acc_ref)

    acc_ref[...] += jnp.dot(a_ref[...], b_ref[...],
                            preferred_element_type=jnp.float32)

    @pl.when(pl.program_id(2) == pl.num_programs(2) - 1)
    def _():
        o_ref[...] = (acc_ref[...] + r_ref[...].astype(jnp.float32)).astype(o_ref.dtype)


def matmul_residual(a, b, res, *, tm=256, tn=512, tk=512):
    """out = a @ b + res (residual add fused into the matmul epilogue)."""
    M, K = a.shape
    K2, N = b.shape
    assert K == K2 and res.shape == (M, N)
    tm, tn, tk = _tile(M, tm, 8), _tile(N, tn, 128), _tile(K, tk, 128)
    return pl.pallas_call(
        _matmul_res_kernel,
        out_shape=jax.ShapeDtypeStruct((M, N), res.dtype),
        grid=(M // tm, N // tn, K // tk),
        in_specs=[pl.BlockSpec((tm, tk), lambda i, j, k: (i, k)),
                  pl.BlockSpec((tk, tn), lambda i, j, k: (k, j)),
                  pl.BlockSpec((tm, tn), lambda i, j, k: (i, j))],
        out_specs=pl.BlockSpec((tm, tn), lambda i, j, k: (i, j)),
        scratch_shapes=[pltpu.VMEM((tm, tn), jnp.float32)],
        compiler_params=pltpu.CompilerParams(
            dimension_semantics=("parallel", "parallel", "arbitrary"),
            vmem_limit_bytes=_VMEM_LIMIT),
    )(a, b, res)


def _mlp_swiglu_kernel(h_ref, w1_ref, w3_ref, o_ref, accg_ref, accu_ref):
    @pl.when(pl.program_id(2) == 0)
    def _():
        accg_ref[...] = jnp.zeros_like(accg_ref)
        accu_ref[...] = jnp.zeros_like(accu_ref)

    h = h_ref[...]
    accg_ref[...] += jnp.dot(h, w1_ref[...], preferred_element_type=jnp.float32)
    accu_ref[...] += jnp.dot(h, w3_ref[...], preferred_element_type=jnp.float32)

    @pl.when(pl.program_id(2) == pl.num_programs(2) - 1)
    def _():
        g = accg_ref[...]
        o_ref[...] = (g * jax.nn.sigmoid(g) * accu_ref[...]).astype(o_ref.dtype)


def mlp_swiglu(h, w1, w3, *, tm=256, tn=512, tk=512):
    """silu(h @ w1) * (h @ w3): w1/w3 matmuls + SwiGLU fused in one pallas_call."""
    M, K = h.shape
    K2, N = w1.shape
    assert K == K2 and w3.shape == (K, N)
    tm, tn, tk = _tile(M, tm, 8), _tile(N, tn, 128), _tile(K, tk, 128)
    return pl.pallas_call(
        _mlp_swiglu_kernel,
        out_shape=jax.ShapeDtypeStruct((M, N), h.dtype),
        grid=(M // tm, N // tn, K // tk),
        in_specs=[pl.BlockSpec((tm, tk), lambda i, j, k: (i, k)),
                  pl.BlockSpec((tk, tn), lambda i, j, k: (k, j)),
                  pl.BlockSpec((tk, tn), lambda i, j, k: (k, j))],
        out_specs=pl.BlockSpec((tm, tn), lambda i, j, k: (i, j)),
        scratch_shapes=[pltpu.VMEM((tm, tn), jnp.float32),
                        pltpu.VMEM((tm, tn), jnp.float32)],
        compiler_params=pltpu.CompilerParams(
            dimension_semantics=("parallel", "parallel", "arbitrary"),
            vmem_limit_bytes=_VMEM_LIMIT),
    )(h, w1, w3)


# ------------------------------- RMSNorm -------------------------------------

def _rmsnorm_kernel(x_ref, w_ref, o_ref, *, eps):
    x = x_ref[...].astype(jnp.float32)
    ms = jnp.mean(x * x, axis=-1, keepdims=True)
    inv = jax.lax.rsqrt(ms + eps)
    o_ref[...] = (x * inv * w_ref[...].astype(jnp.float32)).astype(o_ref.dtype)


def rmsnorm(x, w, eps=1e-5, ts_want=256):
    """x: [S, D], w: [D]; tiled over S with lane-dense (ts, D) blocks."""
    S, D = x.shape
    ts = _tile(S, ts_want, 8)
    return pl.pallas_call(
        partial(_rmsnorm_kernel, eps=eps),
        out_shape=jax.ShapeDtypeStruct((S, D), x.dtype),
        grid=(S // ts,),
        in_specs=[pl.BlockSpec((ts, D), lambda i: (i, 0)),
                  pl.BlockSpec((1, D), lambda i: (0, 0))],
        out_specs=pl.BlockSpec((ts, D), lambda i: (i, 0)),
        compiler_params=pltpu.CompilerParams(
            dimension_semantics=("parallel",),
            vmem_limit_bytes=_VMEM_LIMIT),
    )(x, w.reshape(1, -1))


# ---------------------- flash attention (RoPE fused) --------------------------

def _rotate_half(x):
    h = x.shape[-1] // 2
    # TODO(synk): could use pltpu.roll + sign vector to keep this on the XLU slot.
    return jnp.concatenate([-x[..., h:], x[..., :h]], axis=-1)


def _flash_attn_kernel(q_ref, k_ref, v_ref, cosq_ref, sinq_ref, cosk_ref, sink_ref,
                       o_ref, q_scr, m_scr, l_scr, acc_scr, *, scale):
    qi = pl.program_id(1)
    ki = pl.program_id(2)
    tq = q_ref.shape[1]
    tkv = k_ref.shape[1]
    q_last = (qi + 1) * tq - 1  # last global query row of this q block

    @pl.when(ki * tkv <= q_last)  # skip KV blocks fully above the causal diagonal
    def _():
        @pl.when(ki == 0)
        def _():
            # RoPE + scale fused into the prologue; roped/scaled q cached in scratch.
            q = q_ref[0].astype(jnp.float32)
            q = (q * cosq_ref[...] + _rotate_half(q) * sinq_ref[...]) * scale
            q_scr[...] = q.astype(q_scr.dtype)
            m_scr[...] = jnp.full_like(m_scr, -jnp.inf)
            l_scr[...] = jnp.zeros_like(l_scr)
            acc_scr[...] = jnp.zeros_like(acc_scr)

        k = k_ref[0].astype(jnp.float32)
        k = (k * cosk_ref[...] + _rotate_half(k) * sink_ref[...]).astype(jnp.bfloat16)
        v = v_ref[0]

        # scores = q @ k^T without materializing a transpose (contract last dims).
        s = jax.lax.dot_general(q_scr[...], k, (((1,), (1,)), ((), ())),
                                preferred_element_type=jnp.float32)  # [tq, tkv]

        row = qi * tq + jax.lax.broadcasted_iota(jnp.int32, (tq, tkv), 0)
        col = ki * tkv + jax.lax.broadcasted_iota(jnp.int32, (tq, tkv), 1)
        s = jnp.where(col <= row, s, -1e30)  # causal mask

        m_prev = m_scr[...]
        m_new = jnp.maximum(m_prev, jnp.max(s, axis=-1, keepdims=True))
        alpha = jnp.exp(m_prev - m_new)
        p = jnp.exp(s - m_new)
        l_scr[...] = alpha * l_scr[...] + jnp.sum(p, axis=-1, keepdims=True)
        acc_scr[...] = alpha * acc_scr[...] + jax.lax.dot_general(
            p.astype(v.dtype), v, (((1,), (0,)), ((), ())),
            preferred_element_type=jnp.float32)
        m_scr[...] = m_new

        @pl.when(ki == q_last // tkv)  # last unmasked KV block for this q tile
        def _():
            inv_l = pl.reciprocal(l_scr[...], approx=True)
            o_ref[0] = (acc_scr[...] * inv_l).astype(o_ref.dtype)


def flash_attention(q, k, v, cos, sin, *, tq_want=256, tkv_want=256):
    """q: [nH, S, hd], k/v: [nKV, S, hd] (GQA via index_map), cos/sin: [S, hd]."""
    nH, S, hd = q.shape
    nKV = k.shape[0]
    group = nH // nKV
    scale = 1.0 / math.sqrt(hd)
    tq = _tile(S, tq_want, 8)
    tkv = _tile(S, tkv_want, 8)
    return pl.pallas_call(
        partial(_flash_attn_kernel, scale=scale),
        out_shape=jax.ShapeDtypeStruct((nH, S, hd), q.dtype),
        grid=(nH, S // tq, S // tkv),
        in_specs=[
            pl.BlockSpec((1, tq, hd), lambda h, i, j: (h, i, 0)),
            pl.BlockSpec((1, tkv, hd), lambda h, i, j: (h // group, j, 0)),
            pl.BlockSpec((1, tkv, hd), lambda h, i, j: (h // group, j, 0)),
            pl.BlockSpec((tq, hd), lambda h, i, j: (i, 0)),    # cos for q rows
            pl.BlockSpec((tq, hd), lambda h, i, j: (i, 0)),    # sin for q rows
            pl.BlockSpec((tkv, hd), lambda h, i, j: (j, 0)),   # cos for k rows
            pl.BlockSpec((tkv, hd), lambda h, i, j: (j, 0)),   # sin for k rows
        ],
        out_specs=pl.BlockSpec((1, tq, hd), lambda h, i, j: (h, i, 0)),
        scratch_shapes=[pltpu.VMEM((tq, hd), jnp.bfloat16),   # roped+scaled q
                        pltpu.VMEM((tq, 1), jnp.float32),     # running max
                        pltpu.VMEM((tq, 1), jnp.float32),     # running denom
                        pltpu.VMEM((tq, hd), jnp.float32)],   # output accumulator
        compiler_params=pltpu.CompilerParams(
            dimension_semantics=("parallel", "parallel", "arbitrary"),
            vmem_limit_bytes=_VMEM_LIMIT),
    )(q, k, v, cos, sin, cos, sin)


# ------------------------------ JAX glue --------------------------------------

def rope_cos_sin(S, hd, base=500000.0):
    # TODO(synk): Llama-3.1 RoPE frequency rescaling not applied (synthetic weights).
    inv_freq = 1.0 / (base ** (jnp.arange(0, hd, 2, dtype=jnp.float32) / hd))
    t = jnp.arange(S, dtype=jnp.float32)
    freqs = jnp.outer(t, inv_freq)                       # [S, hd/2]
    emb = jnp.concatenate([freqs, freqs], axis=-1)       # [S, hd]
    return jnp.cos(emb), jnp.sin(emb)


def transformer_block(x, p):
    """x: [S, D] -> [S, D]. Standard Llama block (attn + SwiGLU MLP, pre-RMSNorm)."""
    S, D = x.shape
    nH, nKV, hd = p["n_heads"], p["n_kv_heads"], p["head_dim"]
    cos, sin = p["rope"]

    # ---- attention ----
    h = rmsnorm(x, p["attn_norm"])
    qkv = matmul(h, p["wqkv"])                                 # [S, (nH+2nKV)*hd]
    q = qkv[:, : nH * hd].reshape(S, nH, hd).transpose(1, 0, 2)
    k = qkv[:, nH * hd: (nH + nKV) * hd].reshape(S, nKV, hd).transpose(1, 0, 2)
    v = qkv[:, (nH + nKV) * hd:].reshape(S, nKV, hd).transpose(1, 0, 2)
    # TODO(synk): paged KV cache / current_pos-indexed decode cache not modelled;
    # attention is full causal self-attention over the tokens in x.
    attn = flash_attention(q, k, v, cos, sin)                  # RoPE fused in-kernel
    attn = attn.transpose(1, 0, 2).reshape(S, nH * hd)
    x = matmul_residual(attn, p["wo"], x)                      # residual fused

    # ---- MLP (SwiGLU) ----
    h = rmsnorm(x, p["ffn_norm"])
    gu = mlp_swiglu(h, p["w1"], p["w3"])                       # w1/w3 + SwiGLU fused
    x = matmul_residual(gu, p["w2"], x)                        # residual fused
    return x


def lm_head(x, w_out):
    # TTNN LMHead splits the vocab into 2 column chunks + concat; on TPU a single
    # tiled matmul covers the column split via the tn grid axis (no extra concat copy).
    return matmul(x, w_out, tn=512)


def tt_transformer_forward(x, params, mode="decode", get_last_token=-1):
    """x: [1, 1, S, D] (TTNN layout). Returns hidden [1,1,S,D] (prefill) or
    logits [1, 1, S', vocab]."""
    _, _, S, D = x.shape
    h = x.reshape(S, D)
    for lp in params["layers"]:
        h = transformer_block(h, lp)
    if mode == "prefill" and get_last_token == -1:
        return h.reshape(1, 1, S, D)
    if get_last_token != -1:
        n = min(32, S - get_last_token)
        h = jax.lax.dynamic_slice_in_dim(h, get_last_token, n, axis=0)
    h = rmsnorm(h, params["norm"])
    out = lm_head(h, params["output"])
    return out.reshape(1, 1, h.shape[0], -1)


# ----------------------------- parameter init ---------------------------------

def init_params(key, *, dim, n_heads, n_kv_heads, head_dim, hidden, vocab,
                n_layers, seq):
    keys = jax.random.split(key, n_layers + 1)
    cos, sin = rope_cos_sin(seq, head_dim)
    scale = 0.02
    wdt = jnp.bfloat16
    layers = []
    for i in range(n_layers):
        k = jax.random.split(keys[i], 5)
        layers.append(dict(
            n_heads=n_heads, n_kv_heads=n_kv_heads, head_dim=head_dim,
            rope=(cos, sin),
            attn_norm=jnp.ones((dim,), jnp.float32),
            ffn_norm=jnp.ones((dim,), jnp.float32),
            wqkv=(scale * jax.random.normal(
                k[0], (dim, (n_heads + 2 * n_kv_heads) * head_dim),
                jnp.float32)).astype(wdt),
            wo=(scale * jax.random.normal(
                k[1], (n_heads * head_dim, dim), jnp.float32)).astype(wdt),
            w1=(scale * jax.random.normal(k[2], (dim, hidden), jnp.float32)).astype(wdt),
            w3=(scale * jax.random.normal(k[3], (dim, hidden), jnp.float32)).astype(wdt),
            w2=(scale * jax.random.normal(k[4], (hidden, dim), jnp.float32)).astype(wdt),
        ))
    return dict(
        layers=layers,
        norm=jnp.ones((dim,), jnp.float32),
        output=(scale * jax.random.normal(keys[-1], (dim, vocab),
                                          jnp.float32)).astype(wdt),
    )


# --------------------------------- main ----------------------------------------

if __name__ == "__main__":
    # Small, lane-friendly shapes consistent with the module's structure.
    DIM, N_HEADS, N_KV_HEADS, HEAD_DIM = 128, 4, 2, 32
    HIDDEN, VOCAB, N_LAYERS, SEQ = 256, 512, 2, 8

    key = jax.random.PRNGKey(0)
    pkey, xkey = jax.random.split(key)
    params = init_params(pkey, dim=DIM, n_heads=N_HEADS, n_kv_heads=N_KV_HEADS,
                         head_dim=HEAD_DIM, hidden=HIDDEN, vocab=VOCAB,
                         n_layers=N_LAYERS, seq=SEQ)

    x = jax.random.normal(xkey, (1, 1, SEQ, DIM), jnp.float32).astype(jnp.bfloat16)

    logits = tt_transformer_forward(x, params, mode="decode", get_last_token=-1)
    logits = jax.block_until_ready(logits)
    assert logits.shape == (1, 1, SEQ, VOCAB), logits.shape
    assert bool(jnp.all(jnp.isfinite(logits.astype(jnp.float32))))
    print("KERNEL_OK")
</pallas_src>

<mosaic_0001>
module attributes {stable_mosaic.version = 11 : i64} {
  func.func @_rmsnorm_kernel(%arg0: i32, %arg1: memref<8x128xbf16, #tpu.memory_space<vmem>>, %arg2: memref<1x128xf32, #tpu.memory_space<vmem>>, %arg3: memref<8x128xbf16, #tpu.memory_space<vmem>>) attributes {dimension_semantics = [#tpu.dimension_semantics<parallel>], iteration_bounds = array<i64: 1>, scalar_prefetch = 0 : i64, scratch_operands = 0 : i64, tpu.core_type = #tpu.core_type<tc>, window_params = [{transform_indices = @transform_0, window_bounds = array<i64: 8, 128>}, {pipeline_mode = #tpu.pipeline_mode<synchronous>, transform_indices = @transform_1, window_bounds = array<i64: 1, 128>}, {transform_indices = @transform_2, window_bounds = array<i64: 8, 128>}]} {
    %c0 = arith.constant 0 : index
    %c0_0 = arith.constant 0 : index
    %0 = vector.load %arg1[%c0, %c0_0] : memref<8x128xbf16, #tpu.memory_space<vmem>>, vector<8x128xbf16>
    %1 = arith.extf %0 : vector<8x128xbf16> to vector<8x128xf32>
    %2 = arith.mulf %1, %1 : vector<8x128xf32>
    %cst = arith.constant dense<0.000000e+00> : vector<8xf32>
    %3 = vector.multi_reduction <add>, %2, %cst [1] : vector<8x128xf32> to vector<8xf32>
    %4 = vector.shape_cast %3 : vector<8xf32> to vector<8x1xf32>
    %cst_1 = arith.constant 1.280000e+02 : f32
    %5 = vector.broadcast %cst_1 : f32 to vector<8x1xf32>
    %6 = arith.divf %4, %5 : vector<8x1xf32>
    %cst_2 = arith.constant 9.99999974E-6 : f32
    %7 = vector.broadcast %cst_2 : f32 to vector<8x1xf32>
    %8 = arith.addf %6, %7 : vector<8x1xf32>
    %9 = math.rsqrt %8 : vector<8x1xf32>
    %10 = vector.broadcast %9 : vector<8x1xf32> to vector<8x128xf32>
    %11 = arith.mulf %1, %10 : vector<8x128xf32>
    %c0_3 = arith.constant 0 : index
    %c0_4 = arith.constant 0 : index
    %12 = vector.load %arg2[%c0_3, %c0_4] : memref<1x128xf32, #tpu.memory_space<vmem>>, vector<1x128xf32>
    %13 = vector.broadcast %12 : vector<1x128xf32> to vector<8x128xf32>
    %14 = arith.mulf %11, %13 : vector<8x128xf32>
    %15 = arith.truncf %14 : vector<8x128xf32> to vector<8x128xbf16>
    %c0_5 = arith.constant 0 : index
    %c0_6 = arith.constant 0 : index
    %16 = vector.load %arg3[%c0_5, %c0_6] : memref<8x128xbf16, #tpu.memory_space<vmem>>, vector<8x128xbf16>
    tpu.vector_store %arg3[%c0_5, %c0_6], %15 {strides = array<i32>} : memref<8x128xbf16, #tpu.memory_space<vmem>>, vector<8x128xbf16>,
    return
  }
  func.func @transform_0(%arg0: i32) -> (i32, i32) {
    %c0_i32 = arith.constant 0 : i32
    %c0_i32_0 = arith.constant 0 : i32
    return %arg0, %c0_i32 : i32, i32
  }
  func.func @transform_1(%arg0: i32) -> (i32, i32) {
    %c0_i32 = arith.constant 0 : i32
    %c0_i32_0 = arith.constant 0 : i32
    %c0_i32_1 = arith.constant 0 : i32
    return %c0_i32, %c0_i32_0 : i32, i32
  }
  func.func @transform_2(%arg0: i32) -> (i32, i32) {
    %c0_i32 = arith.constant 0 : i32
    %c0_i32_0 = arith.constant 0 : i32
    return %arg0, %c0_i32 : i32, i32
  }
}

</mosaic_0001>

<llo_original>
// kernel: tpu_custom_call.1
$region0: #{tpu_custom_call.1}
  #allocation0 [shape = 'u32[]', space=smem, size = 0x4, offset = 0x4, fixed_abs, tag = 'smem constant byte address 0x4 - core index']
  #allocation1 [shape = 'u32[144,128]{1,0:T(1,128)}', space=vmem, size = 0x12000, scoped, tag = 'internal scratch']
  %s0 = inlined_call_operand.hbm [shape: bf16[8,128], index: 0, kind: input, shape index: {}]
  %s1 = inlined_call_operand.vmem [shape: f32[1,128], index: 1, kind: input, shape index: {}]
  %s2 = inlined_call_operand.hbm [shape: bf16[8,128], index: 2, kind: output, shape index: {}]
  %s3 = sld [smem:[#allocation0]]
  $region22: #{tpu_custom_call.1} parent=0
    _
  %s5 = ssub.s32 1, %s3
  %s6 = scalar_select 0, %s5, %s3
  $region1: #{tpu_custom_call.1} parent=0
    #allocation2 [shape = 'u8[2048]{0}', space=vmem, size = 0x800, scoped, tag = 'input window, operand 0, single buffered']
    #allocation3 [shape = 's32[1]{0}', space=sflag, size = 0x4, scoped, tag = 'scoped memory for tpu_custom_call.1']
    #allocation4 [shape = 's32[1]{0}', space=sflag, size = 0x4, scoped, tag = 'scoped memory for tpu_custom_call.1']
    #allocation5 [shape = 'u8[2048]{0}', space=vmem, size = 0x800, scoped, tag = 'output window, operand 0, single buffered']
    %7 = vsyncpa [#allocation3], 0
    %8 = vsyncpa [#allocation4], 0
    // Predicated region
    $region2: #{tpu_custom_call.1} parent=1 // pred_check
      _
    $region3: #{tpu_custom_call.1} parent=1 // pred_check_branch
      %10 = sbr.rel (0) target = $region5
    $region4: #{tpu_custom_call.1} parent=1 // pred_region
      %s12 = ssub.s32 64, 64
      %13 = vsyncadd [#allocation3], %s12
      %s15 = sshll.u32 [#allocation2], 4
      %s16 = int_to_ptr.vmem [resolvable:$true] %s15
      %18 = dma.hbm_to_vmem [thread:$0]  %s0, 64, %s16, [#allocation3]
    $region5: #{tpu_custom_call.1} parent=1 // pred_fallthru
      _
    // Predicated region
    $region6: #{tpu_custom_call.1} parent=1 // pred_check
      _
    $region7: #{tpu_custom_call.1} parent=1 // pred_check_branch
      %20 = sbr.rel (0) target = $region9
    $region8: #{tpu_custom_call.1} parent=1 // pred_region
      _
    $region9: #{tpu_custom_call.1} parent=1 // pred_fallthru
      _
    // Predicated region
    $region10: #{tpu_custom_call.1} parent=1 // pred_check
      _
    $region11: #{tpu_custom_call.1} parent=1 // pred_check_branch
      %22 = sbr.rel (0) target = $region13
    $region12: #{tpu_custom_call.1} parent=1 // pred_region
      %23 = dma.done [#allocation3], 64
    $region13: #{tpu_custom_call.1} parent=1 // pred_fallthru
      _
    %v24 = vld [vmem:[#allocation2] sm:$0xf]
    %v25 = vunpack.c.l.bf16 %v24
    %v26 = vmul.f32 %v25, %v25
    %27 = vadd.xlane.f32.xlu0 %v26
    %v28 = vpop.xlane.xlu0 %27
    %v29 = vrcp.pop 128.0
    %v30 = vmul.f32 %v28, %v29
    %v31 = vadd.f32 %v30, 1e-05
    %v32 = vrsqrt.pop %v31
    %v33 = vmul.f32 %v25, %v32
    %v34 = vld [vmem:[%s1] sm:$0x1]
    %v36 = vlaneseq
    %v37 = vshrl.u32 %v36, 7
    %v38 = vsub.s32 0, %v37
    %v39 = vrot.slane %v34, %v38
    %v41 = vmul.f32 %v33, %v39
    %v42 = vpack.c.bf16 %v41, %v41
    %43 = vst [vmem:[#allocation5] sm:$0xf] %v42
    // Predicated region
    $region14: #{tpu_custom_call.1} parent=1 // pred_check
      _
    $region15: #{tpu_custom_call.1} parent=1 // pred_check_branch
      %45 = sbr.rel (0) target = $region17
    $region16: #{tpu_custom_call.1} parent=1 // pred_region
      %s47 = ssub.s32 64, 64
      %48 = vsyncadd [#allocation4], %s47
      %s50 = sshll.u32 [#allocation5], 4
      %s51 = int_to_ptr.vmem [resolvable:$true] %s50
      %53 = dma.vmem_to_hbm [thread:$0]  %s51, 64, %s2, [#allocation4]
    $region17: #{tpu_custom_call.1} parent=1 // pred_fallthru
      _
    // Predicated region
    $region18: #{tpu_custom_call.1} parent=1 // pred_check
      _
    $region19: #{tpu_custom_call.1} parent=1 // pred_check_branch
      %55 = sbr.rel (0) target = $region21
    $region20: #{tpu_custom_call.1} parent=1 // pred_region
      %56 = dma.done [#allocation4], 64
    $region21: #{tpu_custom_call.1} parent=1 // pred_fallthru
      _
    %57 = vsyncpa [#allocation3], 1
    %58 = vsyncpa [#allocation4], 1

</llo_original>
